<compile_context>
chip_gen: v7x
topology: tpu7x:2x2x1
jax: 0.10.0
libtpu: 0.0.40
codegen_flags: <defaults>
</compile_context>

<pallas_src>
import jax
import jax.numpy as jnp
from jax.experimental import pallas as pl
from jax.experimental.pallas import tpu as pltpu


def _cdiv(a: int, b: int) -> int:
    return -(-a // b)


def _round_up(v: int, m: int) -> int:
    return ((v + m - 1) // m) * m


def _chip_params():
    """Returns (vmem_capacity_bytes, tensorcores_per_chip) with safe fallbacks."""
    vmem_cap = 64 * 1024 * 1024            # conservative default (v7x per-core)
    cores = 1
    try:
        info = pltpu.get_tpu_info()
        cap = getattr(info, "vmem_capacity_bytes", None)
        if cap:
            vmem_cap = int(cap)
    except Exception:
        pass
    try:
        kind = (getattr(jax.devices()[0], "device_kind", "") or "").lower()
        if "v7" in kind or "7x" in kind:   # v7x: 2 TensorCores per chip
            cores = 2
    except Exception:
        pass
    return vmem_cap, cores


def laploss_pallas(x: jax.Array) -> jax.Array:
    """Computes LapLoss(x) for x of shape (B, C, H, W)."""
    B, C, H, W = x.shape
    norm = float(C * H * W) * float(B)
    itemsize = x.dtype.itemsize

    # ---- layout: make the lane (last) axis dense --------------------------
    if W < 128:
        # Fold channels into lanes: (B, C, H, W) -> (B, H, C*W).
        x2 = jnp.transpose(x, (0, 2, 1, 3)).reshape(B, H, C * W)
        Hn, Wn, period = H, C * W, W
        # TODO(synk): folding H-rows into lanes too would need select-corrected
        # vertical rolls; not done here.
    else:
        # Already lane-dense; flattening (B, C) is a free reshape, no transpose.
        x2 = x.reshape(B * C, H, W)
        Hn, Wn, period = H, W, W
    N = x2.shape[0]

    # ---- precomputed interior mask (resident, single mul in-kernel) -------
    rows = jnp.arange(Hn, dtype=jnp.int32)[:, None]
    cols = jnp.arange(Wn, dtype=jnp.int32)[None, :] % period
    mask = ((rows >= 1) & (rows <= H - 2) &
            (cols >= 1) & (cols <= W - 2)).astype(jnp.float32)

    # ---- generation-aware, padding-aware tiling ----------------------------
    vmem_cap, cores = _chip_params()
    vmem_limit = int(min(vmem_cap * 3 // 4, 96 * 1024 * 1024))
    block_budget = int(max(512 * 1024, min(vmem_limit // 16, 8 * 1024 * 1024)))

    # Physical (8,128)-padded bytes of one (Hn, Wn) plane, counted at f32
    # (size of the in-kernel intermediates), so the budget is honest.
    padded_plane = _round_up(Hn, 8) * _round_up(Wn, 128) * 4

    # Partial-sum partitions: only split when the chip has 2 TensorCores.
    P = 2 if (cores >= 2 and N >= 2) else 1
    per_part = _cdiv(N, P)
    tB = int(max(1, min(per_part, block_budget // padded_plane)))
    NB = int(_cdiv(per_part, tB))
    N_pad = P * NB * tB
    if N_pad > N:
        # Zero planes contribute exactly zero to the loss.
        x2 = jnp.pad(x2, ((0, N_pad - N), (0, 0), (0, 0)))

    def kernel(x_ref, m_ref, out_ref):
        step = pl.program_id(1)

        @pl.when(step == 0)
        def _init():
            out_ref[...] = jnp.zeros_like(out_ref)

        xv = x_ref[...]                                        # (tB, Hn, Wn)
        # Cyclic rolls (XLU slot) instead of unaligned slices; rolls stay in
        # the native input dtype, arithmetic/accumulation in f32.
        up    = pltpu.roll(xv, shift=1,      axis=1).astype(jnp.float32)
        down  = pltpu.roll(xv, shift=Hn - 1, axis=1).astype(jnp.float32)
        left  = pltpu.roll(xv, shift=1,      axis=2).astype(jnp.float32)
        right = pltpu.roll(xv, shift=Wn - 1, axis=2).astype(jnp.float32)
        lap = (up + down) + (left + right) - 4.0 * xv.astype(jnp.float32)
        # Reduce over the batch-tile axis first, then ONE mask multiply per
        # (Hn, Wn) element (the mask is independent of the reduced axis).
        plane = jnp.sum(lap * lap, axis=0)                     # (Hn, Wn) f32
        out_ref[...] += (plane * m_ref[...])[None]

    in_spec = pl.BlockSpec((tB, Hn, Wn), lambda p, b: (p * NB + b, 0, 0))
    mask_spec = pl.BlockSpec((Hn, Wn), lambda p, b: (0, 0))    # resident
    out_spec = pl.BlockSpec((1, Hn, Wn), lambda p, b: (p, 0, 0))

    cost = pl.CostEstimate(
        flops=8 * N_pad * Hn * Wn,
        transcendentals=0,
        bytes_accessed=N_pad * Hn * Wn * itemsize + (P + 1) * Hn * Wn * 4)

    def build(dim0_sem):
        return pl.pallas_call(
            kernel,
            out_shape=jax.ShapeDtypeStruct((P, Hn, Wn), jnp.float32),
            grid=(P, NB),
            in_specs=[in_spec, mask_spec],
            out_specs=out_spec,
            compiler_params=pltpu.CompilerParams(
                dimension_semantics=(dim0_sem, pltpu.ARBITRARY),
                vmem_limit_bytes=vmem_limit),
            cost_estimate=cost)

    if P == 2 and hasattr(pltpu, "CORE_PARALLEL"):
        # v7x: actually shard the partial-sum axis across both TensorCores.
        try:
            partials = build(pltpu.CORE_PARALLEL)(x2, mask)
        except Exception:
            partials = build(pltpu.PARALLEL)(x2, mask)
    else:
        partials = build(pltpu.PARALLEL)(x2, mask)

    # Single final cross-lane reduce + normalization in the wrapper (f32).
    return jnp.sum(partials) / norm


def laploss_ref(x: jax.Array) -> jax.Array:
    """Pure-JAX reference (mirrors the PyTorch forward)."""
    B, C, H, W = x.shape
    lap = (x[:, :, 0:H - 2, 1:W - 1] + x[:, :, 2:H, 1:W - 1]
           + x[:, :, 1:H - 1, 0:W - 2] + x[:, :, 1:H - 1, 2:W]
           - 4.0 * x[:, :, 1:H - 1, 1:W - 1])
    return jnp.sum(lap * lap) / (C * H * W) / B


if __name__ == "__main__":
    key = jax.random.PRNGKey(0)
    # Module implies C=3 (3x3 Laplacian repeated 3x, groups=3).
    x = jax.random.normal(key, (2, 3, 16, 16), dtype=jnp.float32)

    loss = laploss_pallas(x)
    loss = jax.block_until_ready(loss)

    ref = laploss_ref(x)
    assert jnp.allclose(loss, ref, rtol=1e-5, atol=1e-5), (loss, ref)

    print("KERNEL_OK")
</pallas_src>

<mosaic_0001>
module attributes {stable_mosaic.version = 11 : i64} {
  func.func @kernel(%arg0: i32, %arg1: i32, %arg2: memref<2x16x48xf32, #tpu.memory_space<vmem>>, %arg3: memref<16x48xf32, #tpu.memory_space<vmem>>, %arg4: memref<1x16x48xf32, #tpu.memory_space<vmem>>) attributes {dimension_semantics = [#tpu.dimension_semantics<parallel>, #tpu.dimension_semantics<arbitrary>], iteration_bounds = array<i64: 1, 1>, scalar_prefetch = 0 : i64, scratch_operands = 0 : i64, tpu.core_type = #tpu.core_type<tc>, window_params = [{transform_indices = @transform_0, window_bounds = array<i64: 2, 16, 48>}, {pipeline_mode = #tpu.pipeline_mode<synchronous>, transform_indices = @transform_1, window_bounds = array<i64: 16, 48>}, {transform_indices = @transform_2, window_bounds = array<i64: 1, 16, 48>}]} {
    %c0_i32 = arith.constant 0 : i32
    %0 = arith.cmpi eq, %arg1, %c0_i32 : i32
    %1 = arith.extui %0 : i1 to i32
    %c0_i32_0 = arith.constant 0 : i32
    %2 = arith.cmpi ne, %1, %c0_i32_0 : i32
    scf.if %2 {
      %cst_13 = arith.constant 0.000000e+00 : f32
      %22 = vector.broadcast %cst_13 : f32 to vector<1x16x48xf32>
      %c0_14 = arith.constant 0 : index
      %c0_15 = arith.constant 0 : index
      %c0_16 = arith.constant 0 : index
      %23 = vector.load %arg4[%c0_14, %c0_15, %c0_16] : memref<1x16x48xf32, #tpu.memory_space<vmem>>, vector<1x16x48xf32>
      tpu.vector_store %arg4[%c0_14, %c0_15, %c0_16], %22 {strides = array<i32>} : memref<1x16x48xf32, #tpu.memory_space<vmem>>, vector<1x16x48xf32>,
    } else {
    }
    %c0 = arith.constant 0 : index
    %c0_1 = arith.constant 0 : index
    %c0_2 = arith.constant 0 : index
    %3 = vector.load %arg2[%c0, %c0_1, %c0_2] : memref<2x16x48xf32, #tpu.memory_space<vmem>>, vector<2x16x48xf32>
    %c1_i32 = arith.constant 1 : i32
    %4 = tpu.dynamic_rotate %3 by %c1_i32 dim 1 : vector<2x16x48xf32>, i32 -> vector<2x16x48xf32>
    %c15_i32 = arith.constant 15 : i32
    %5 = tpu.dynamic_rotate %3 by %c15_i32 dim 1 : vector<2x16x48xf32>, i32 -> vector<2x16x48xf32>
    %c1_i32_3 = arith.constant 1 : i32
    %6 = tpu.dynamic_rotate %3 by %c1_i32_3 dim 2 : vector<2x16x48xf32>, i32 -> vector<2x16x48xf32>
    %c47_i32 = arith.constant 47 : i32
    %7 = tpu.dynamic_rotate %3 by %c47_i32 dim 2 : vector<2x16x48xf32>, i32 -> vector<2x16x48xf32>
    %8 = arith.addf %4, %5 : vector<2x16x48xf32>
    %9 = arith.addf %6, %7 : vector<2x16x48xf32>
    %10 = arith.addf %8, %9 : vector<2x16x48xf32>
    %cst = arith.constant 4.000000e+00 : f32
    %11 = vector.broadcast %cst : f32 to vector<2x16x48xf32>
    %12 = arith.mulf %11, %3 : vector<2x16x48xf32>
    %13 = arith.subf %10, %12 : vector<2x16x48xf32>
    %14 = arith.mulf %13, %13 : vector<2x16x48xf32>
    %cst_4 = arith.constant dense<0.000000e+00> : vector<16x48xf32>
    %15 = vector.multi_reduction <add>, %14, %cst_4 [0] : vector<2x16x48xf32> to vector<16x48xf32>
    %c0_5 = arith.constant 0 : index
    %c0_6 = arith.constant 0 : index
    %c0_7 = arith.constant 0 : index
    %16 = vector.load %arg4[%c0_5, %c0_6, %c0_7] : memref<1x16x48xf32, #tpu.memory_space<vmem>>, vector<1x16x48xf32>
    %c0_8 = arith.constant 0 : index
    %c0_9 = arith.constant 0 : index
    %17 = vector.load %arg3[%c0_8, %c0_9] : memref<16x48xf32, #tpu.memory_space<vmem>>, vector<16x48xf32>
    %18 = arith.mulf %15, %17 : vector<16x48xf32>
    %19 = vector.shape_cast %18 : vector<16x48xf32> to vector<1x16x48xf32>
    %20 = arith.addf %16, %19 : vector<1x16x48xf32>
    %c0_10 = arith.constant 0 : index
    %c0_11 = arith.constant 0 : index
    %c0_12 = arith.constant 0 : index
    %21 = vector.load %arg4[%c0_10, %c0_11, %c0_12] : memref<1x16x48xf32, #tpu.memory_space<vmem>>, vector<1x16x48xf32>
    tpu.vector_store %arg4[%c0_10, %c0_11, %c0_12], %20 {strides = array<i32>} : memref<1x16x48xf32, #tpu.memory_space<vmem>>, vector<1x16x48xf32>,
    return
  }
  func.func @transform_0(%arg0: i32, %arg1: i32) -> (i32, i32, i32) {
    %c1_i32 = arith.constant 1 : i32
    %0 = arith.muli %arg0, %c1_i32 : i32
    %1 = arith.addi %0, %arg1 : i32
    %c0_i32 = arith.constant 0 : i32
    %c0_i32_0 = arith.constant 0 : i32
    %c0_i32_1 = arith.constant 0 : i32
    return %1, %c0_i32, %c0_i32_0 : i32, i32, i32
  }
  func.func @transform_1(%arg0: i32, %arg1: i32) -> (i32, i32) {
    %c0_i32 = arith.constant 0 : i32
    %c0_i32_0 = arith.constant 0 : i32
    %c0_i32_1 = arith.constant 0 : i32
    return %c0_i32, %c0_i32_0 : i32, i32
  }
  func.func @transform_2(%arg0: i32, %arg1: i32) -> (i32, i32, i32) {
    %c0_i32 = arith.constant 0 : i32
    %c0_i32_0 = arith.constant 0 : i32
    %c0_i32_1 = arith.constant 0 : i32
    return %arg0, %c0_i32, %c0_i32_0 : i32, i32, i32
  }
}

</mosaic_0001>

<llo_original>
// kernel: tpu_custom_call.1
$region0: #{tpu_custom_call.1}
  #allocation0 [shape = 'u32[]', space=smem, size = 0x4, offset = 0x4, fixed_abs, tag = 'smem constant byte address 0x4 - core index']
  #allocation1 [shape = 'u32[144,128]{1,0:T(1,128)}', space=vmem, size = 0x12000, scoped, tag = 'internal scratch']
  %s0 = inlined_call_operand.hbm [shape: f32[2,16,48], index: 0, kind: input, shape index: {}]
  %s1 = inlined_call_operand.hbm [shape: f32[16,48], index: 1, kind: input, shape index: {}]
  %s2 = inlined_call_operand.hbm [shape: f32[1,16,48], index: 2, kind: output, shape index: {}]
  %s3 = sld [smem:[#allocation0]]
  $region30: #{tpu_custom_call.1} parent=0
    _
  %s5 = ssub.s32 1, %s3
  %s6 = scalar_select 0, %s5, %s3
  $region1: #{tpu_custom_call.1} parent=0
    #allocation2 [shape = 'u8[16384]{0}', space=vmem, size = 0x4000, scoped, tag = 'input window, operand 0, single buffered']
    #allocation3 [shape = 's32[1]{0}', space=sflag, size = 0x4, scoped, tag = 'scoped memory for tpu_custom_call.1']
    #allocation4 [shape = 's32[1]{0}', space=sflag, size = 0x4, scoped, tag = 'scoped memory for tpu_custom_call.1']
    #allocation5 [shape = 'u8[8192]{0}', space=vmem, size = 0x2000, scoped, tag = 'input window, operand 1, single buffered']
    #allocation6 [shape = 's32[1]{0}', space=sflag, size = 0x4, scoped, tag = 'scoped memory for tpu_custom_call.1']
    #allocation7 [shape = 'u8[8192]{0}', space=vmem, size = 0x2000, scoped, tag = 'output window, operand 0, single buffered']
    %7 = vsyncpa [#allocation3], 0
    %8 = vsyncpa [#allocation6], 0
    %9 = vsyncpa [#allocation4], 0
    // Predicated region
    $region2: #{tpu_custom_call.1} parent=1 // pred_check
      _
    $region3: #{tpu_custom_call.1} parent=1 // pred_check_branch
      %11 = sbr.rel (0) target = $region5
    $region4: #{tpu_custom_call.1} parent=1 // pred_region
      %s12 = sadd.s32 0, 0
      %s13 = smul.u32 2, %s12
      %s15 = ssub.s32 512, 512
      %16 = vsyncadd [#allocation3], %s15
      %s17 = smul.addr %s13, 2
      %s18 = smul.addr %s17, 128
      %s19 = scalar_lea.hbm %s0, %s18
      %s20 = sshll.u32 [#allocation2], 4
      %s21 = int_to_ptr.vmem [resolvable:$true] %s20
      %26 = dma.hbm_to_vmem [thread:$0]  %s19, 512, %s21, [#allocation3], 128, 128, 8
    $region5: #{tpu_custom_call.1} parent=1 // pred_fallthru
      _
    // Predicated region
    $region6: #{tpu_custom_call.1} parent=1 // pred_check
      _
    $region7: #{tpu_custom_call.1} parent=1 // pred_check_branch
      %28 = sbr.rel (0) target = $region9
    $region8: #{tpu_custom_call.1} parent=1 // pred_region
      %s30 = ssub.s32 256, 256
      %31 = vsyncadd [#allocation6], %s30
      %s32 = sshll.u32 [#allocation5], 4
      %s33 = int_to_ptr.vmem [resolvable:$true] %s32
      %38 = dma.hbm_to_vmem [thread:$0]  %s1, 256, %s33, [#allocation6], 128, 128, 8
    $region9: #{tpu_custom_call.1} parent=1 // pred_fallthru
      _
    // Predicated region
    $region10: #{tpu_custom_call.1} parent=1 // pred_check
      _
    $region11: #{tpu_custom_call.1} parent=1 // pred_check_branch
      %40 = sbr.rel (0) target = $region13
    $region12: #{tpu_custom_call.1} parent=1 // pred_region
      %41 = dma.done [#allocation3], 512
    $region13: #{tpu_custom_call.1} parent=1 // pred_fallthru
      _
    // Predicated region
    $region14: #{tpu_custom_call.1} parent=1 // pred_check
      _
    $region15: #{tpu_custom_call.1} parent=1 // pred_check_branch
      %43 = sbr.rel (0) target = $region17
    $region16: #{tpu_custom_call.1} parent=1 // pred_region
      %44 = dma.done [#allocation6], 256
    $region17: #{tpu_custom_call.1} parent=1 // pred_fallthru
      _
    %s45 = sadd.s32 0, 0
    %s46 = smul.u32 2, %s45
    %p47 = scmp.eq.s32.totalorder 0, 0
    // Predicated region
    $region18: #{tpu_custom_call.1} parent=1 // pred_check
      %p48 = pneg %p47
    $region19: #{tpu_custom_call.1} parent=1 // pred_check_branch
      %50 = sbr.rel (%p48) target = $region21
    $region20: #{tpu_custom_call.1} parent=1 // pred_region
      %vm51 = vcmask 392192
      %52 = vst.msk [vmem:[#allocation7] sm:$0xff] %vm51, 0.0
      %53 = vst.msk [vmem:[#allocation7 + $0x8] sm:$0xff] %vm51, 0.0
    $region21: #{tpu_custom_call.1} parent=1 // pred_fallthru
      _
    %v54 = vld [vmem:[#allocation2] sm:$0xff]
    %v55 = vld [vmem:[#allocation2 + $0x8] sm:$0xff]
    %v56 = vld [vmem:[#allocation2 + $0x10] sm:$0xff]
    %v57 = vld [vmem:[#allocation2 + $0x18] sm:$0xff]
    %v58 = vrot.slane %v54, 7
    %v59 = vrot.slane %v56, 7
    %v60 = vrot.slane %v55, 7
    %v61 = vrot.slane %v57, 7
    %v62 = vlaneseq
    %v63 = vshrl.u32 %v62, 7
    %vm64 = vcmp.lt.s32.totalorder %v63, 1
    %v65 = vsel %vm64, %v58, %v60
    %v66 = vsel %vm64, %v59, %v61
    %v67 = vsel %vm64, %v60, %v58
    %v68 = vsel %vm64, %v61, %v59
    %v69 = vrot.slane %v54, 1
    %v70 = vrot.slane %v56, 1
    %v71 = vrot.slane %v55, 1
    %v72 = vrot.slane %v57, 1
    %vm73 = vcmp.lt.s32.totalorder %v63, 7
    %v74 = vsel %vm73, %v69, %v71
    %v75 = vsel %vm73, %v70, %v72
    %v76 = vsel %vm73, %v71, %v69
    %v77 = vsel %vm73, %v72, %v70
    %vm78 = vcmask 1047936
    %79 = vrot.lane.b32.xlu0 %v54, 48
    %v80 = vpop.permute.xlu0 %79
    %v81 = vsel %vm78, %v80, %v54
    %82 = vrot.lane.b32.xlu0 %v55, 48
    %v83 = vpop.permute.xlu0 %82
    %v84 = vsel %vm78, %v83, %v55
    %85 = vrot.lane.b32.xlu0 %v56, 48
    %v86 = vpop.permute.xlu0 %85
    %v87 = vsel %vm78, %v86, %v56
    %88 = vrot.lane.b32.xlu0 %v57, 48
    %v89 = vpop.permute.xlu0 %88
    %v90 = vsel %vm78, %v89, %v57
    %91 = vrot.lane.b32.xlu0 %v81, 48
    %v92 = vpop.permute.xlu0 %91
    %93 = vrot.lane.b32.xlu0 %v84, 48
    %v94 = vpop.permute.xlu0 %93
    %95 = vrot.lane.b32.xlu0 %v87, 48
    %v96 = vpop.permute.xlu0 %95
    %97 = vrot.lane.b32.xlu0 %v90, 48
    %v98 = vpop.permute.xlu0 %97
    %v99 = vsel %vm78, %v92, %v54
    %v100 = vsel %vm78, %v94, %v55
    %v101 = vsel %vm78, %v96, %v56
    %v102 = vsel %vm78, %v98, %v57
    %v103 = vadd.f32 %v67, %v74
    %v104 = vadd.f32 %v65, %v76
    %v105 = vadd.f32 %v68, %v75
    %v106 = vadd.f32 %v66, %v77
    %111 = vrot.lane.b32.xlu0 %v99, 46
    %v112 = vpop.permute.xlu0 %111
    %113 = vrot.lane.b32.xlu0 %v100, 46
    %v114 = vpop.permute.xlu0 %113
    %115 = vrot.lane.b32.xlu0 %v101, 46
    %v116 = vpop.permute.xlu0 %115
    %117 = vrot.lane.b32.xlu0 %v102, 46
    %v118 = vpop.permute.xlu0 %117
    %v123 = vadd.f32 %v99, %v112
    %v124 = vadd.f32 %v100, %v114
    %v125 = vadd.f32 %v101, %v116
    %v126 = vadd.f32 %v102, %v118
    %131 = vrot.lane.b32.xlu0 %v123, 81
    %v132 = vpop.permute.xlu0 %131
    %133 = vrot.lane.b32.xlu0 %v124, 81
    %v134 = vpop.permute.xlu0 %133
    %135 = vrot.lane.b32.xlu0 %v125, 81
    %v136 = vpop.permute.xlu0 %135
    %137 = vrot.lane.b32.xlu0 %v126, 81
    %v138 = vpop.permute.xlu0 %137
    %v143 = vadd.f32 %v103, %v132
    %v144 = vadd.f32 %v104, %v134
    %v145 = vadd.f32 %v105, %v136
    %v146 = vadd.f32 %v106, %v138
    %v147 = vmul.f32 %v54, 4.0
    %v148 = vmul.f32 %v55, 4.0
    %v149 = vmul.f32 %v56, 4.0
    %v150 = vmul.f32 %v57, 4.0
    %v151 = vsub.f32 %v143, %v147
    %v152 = vsub.f32 %v144, %v148
    %v153 = vsub.f32 %v145, %v149
    %v154 = vsub.f32 %v146, %v150
    %v155 = vmul.f32 %v151, %v151
    %v156 = vmul.f32 %v152, %v152
    %v157 = vmul.f32 %v153, %v153
    %v158 = vmul.f32 %v154, %v154
    %vm159 = vcmask 392192
    %v160 = vsel %vm159, %v155, 0.0
    %v161 = vsel %vm159, %v157, 0.0
    %v162 = vadd.f32 %v160, %v161
    %v163 = vsel %vm159, %v156, 0.0
    %v164 = vsel %vm159, %v158, 0.0
    %v165 = vadd.f32 %v163, %v164
    %v166 = vld [vmem:[#allocation7] sm:$0xff]
    %v167 = vld [vmem:[#allocation7 + $0x8] sm:$0xff]
    %v168 = vld [vmem:[#allocation5] sm:$0xff]
    %v169 = vld [vmem:[#allocation5 + $0x8] sm:$0xff]
    %v170 = vmul.f32 %v162, %v168
    %v171 = vmul.f32 %v165, %v169
    %v172 = vadd.f32 %v166, %v170
    %v173 = vadd.f32 %v167, %v171
    %174 = vst.msk [vmem:[#allocation7] sm:$0xff] %vm159, %v172
    %175 = vst.msk [vmem:[#allocation7 + $0x8] sm:$0xff] %vm159, %v173
    // Predicated region
    $region22: #{tpu_custom_call.1} parent=1 // pred_check
      _
    $region23: #{tpu_custom_call.1} parent=1 // pred_check_branch
      %177 = sbr.rel (0) target = $region25
    $region24: #{tpu_custom_call.1} parent=1 // pred_region
      %s179 = ssub.s32 256, 256
      %180 = vsyncadd [#allocation4], %s179
      %s181 = sshll.u32 [#allocation7], 4
      %s182 = int_to_ptr.vmem [resolvable:$true] %s181
      %187 = dma.vmem_to_hbm [thread:$0]  %s182, 256, %s2, [#allocation4], 128, 128, 8
    $region25: #{tpu_custom_call.1} parent=1 // pred_fallthru
      _
    // Predicated region
    $region26: #{tpu_custom_call.1} parent=1 // pred_check
      _
    $region27: #{tpu_custom_call.1} parent=1 // pred_check_branch
      %189 = sbr.rel (0) target = $region29
    $region28: #{tpu_custom_call.1} parent=1 // pred_region
      %190 = dma.done [#allocation4], 256
    $region29: #{tpu_custom_call.1} parent=1 // pred_fallthru
      _
    %191 = vsyncpa [#allocation3], 1
    %192 = vsyncpa [#allocation6], 1
    %193 = vsyncpa [#allocation4], 1

</llo_original>
